<compile_context>
chip_gen: v6e
topology: v6e:2x2x1
jax: 0.10.0
libtpu: 0.0.40
codegen_flags: <defaults>
</compile_context>

<pallas_src>
from functools import partial as _partial

import jax
import jax.numpy as jnp
from jax import lax
from jax.experimental import pallas as pl
from jax.experimental.pallas import tpu as pltpu

_NEG_FLOOR = -1e30  # finite init for the running max (avoids -inf - -inf = NaN)


def _gist_loss_kernel(a_ref, p_ref, pt_ref, at_ref,
                      ap_sc_ref, aa_sc_ref, pp_sc_ref, cut_ref,
                      ce_ref, m_acc, l_acc, lbl_acc, *, mb, tn):
    """One (row-tile, column-tile) step of the masked-softmax cross entropy.

    a_ref   : (mb, D)  bf16  L2-normalized anchor rows   * (1/temperature)
    p_ref   : (mb, D)  bf16  L2-normalized positive rows * (1/temperature)
    pt_ref  : (D, tn)  bf16  column tile of positives^T  (L2-normalized)
    at_ref  : (D, tn)  bf16  column tile of anchors^T    (L2-normalized)
    ap_sc_ref / aa_sc_ref / pp_sc_ref : (mb, tn) f32 reranker score tiles
    cut_ref : (mb, 1)  f32  per-row false-negative cutoff (margin folded in)
    ce_ref  : (mb, 1)  f32  per-row cross entropy (written at last column step)
    m_acc / l_acc / lbl_acc : (mb, 1) f32 online-logsumexp state (VMEM scratch)
    """
    j = pl.program_id(1)

    @pl.when(j == 0)
    def _():
        m_acc[...] = jnp.full(m_acc.shape, _NEG_FLOOR, dtype=jnp.float32)
        l_acc[...] = jnp.zeros(l_acc.shape, dtype=jnp.float32)
        lbl_acc[...] = jnp.zeros(lbl_acc.shape, dtype=jnp.float32)

    a = a_ref[...]
    p = p_ref[...]
    pt = pt_ref[...]
    # Three MXU calls per step give the ap / aa / pp logit tiles; normalization
    # and 1/temperature are folded into the operands, so no post-scaling.
    ap = jnp.dot(a, pt, preferred_element_type=jnp.float32)           # (mb, tn)
    aa = jnp.dot(a, at_ref[...], preferred_element_type=jnp.float32)  # (mb, tn)
    pp = jnp.dot(p, pt, preferred_element_type=jnp.float32)           # (mb, tn)

    # Cheap positive mask: (mb,1) row-ids vs (1,tn) col-ids broadcast compare.
    row = pl.program_id(0) * mb + lax.broadcasted_iota(jnp.int32, (mb, 1), 0)
    col = j * tn + lax.broadcasted_iota(jnp.int32, (1, tn), 1)
    pos = col == row                                                   # (mb, tn)

    cut = cut_ref[...]                                                 # (mb, 1)
    neg_inf = jnp.float32(-jnp.inf)
    ap = jnp.where((ap_sc_ref[...] > cut) & jnp.logical_not(pos), neg_inf, ap)
    aa = jnp.where(aa_sc_ref[...] > cut, neg_inf, aa)
    pp = jnp.where(pp_sc_ref[...] > cut, neg_inf, pp)

    # The label column (diagonal of the ap block) appears in exactly one column
    # tile and is never masked, so this accumulation is exact.
    lbl_acc[...] += jnp.sum(jnp.where(pos, ap, 0.0), axis=1, keepdims=True)

    # Online (flash-style) logsumexp over the three logit tiles.
    m_prev = m_acc[...]
    tile_max = jnp.maximum(jnp.maximum(jnp.max(ap, axis=1, keepdims=True),
                                       jnp.max(aa, axis=1, keepdims=True)),
                           jnp.max(pp, axis=1, keepdims=True))
    m_new = jnp.maximum(m_prev, tile_max)          # always finite (>= _NEG_FLOOR)
    l_acc[...] = (jnp.exp(m_prev - m_new) * l_acc[...]
                  + jnp.sum(jnp.exp(ap - m_new), axis=1, keepdims=True)
                  + jnp.sum(jnp.exp(aa - m_new), axis=1, keepdims=True)
                  + jnp.sum(jnp.exp(pp - m_new), axis=1, keepdims=True))
    m_acc[...] = m_new

    @pl.when(j == pl.num_programs(1) - 1)
    def _():
        # per-row CE with label = ap diagonal: ce = logsumexp - label_logit
        ce_ref[...] = (m_acc[...] - lbl_acc[...]) + jnp.log(l_acc[...])


def _vmem_capacity_bytes():
    try:
        info = pltpu.get_tpu_info()
        cap = getattr(info, "vmem_capacity_bytes", None)
        if cap:
            return int(cap)
    except Exception:
        pass
    return 64 << 20  # conservative cross-generation floor (v7x per-TC VMEM)


def reranker_cached_gist_loss(anchors, positives, ap_scores, aa_scores, pp_scores,
                              *, temperature=0.01, margin=0.0,
                              margin_strategy="absolute",
                              mini_batch_size=256, col_tile=512,
                              compute_dtype=jnp.bfloat16):
    """Forward loss of RerankerCachedGISTEmbedLoss.calculate_loss (no backward).

    The forward loss is independent of the mini-batch partition (each row's CE
    depends only on its own scores), so the row tile is just a hardware tile.
    """
    B, D = anchors.shape
    mb = min(mini_batch_size, B)
    tn = min(col_tile, B)
    assert B % mb == 0, "batch must be divisible by the row tile"
    assert B % tn == 0, "batch must be divisible by the column tile"
    num_mb = B // mb
    num_col = B // tn

    # Normalize once (nn.CosineSimilarity, eps=1e-8) and fold 1/temperature
    # into the LHS rows so the kernel's cosine-sim + scale is pure MXU work.
    def _normalize(x):
        x = x.astype(jnp.float32)
        n = jnp.sqrt(jnp.sum(x * x, axis=-1, keepdims=True))
        return x / jnp.maximum(n, 1e-8)

    a_n = _normalize(anchors)
    p_n = _normalize(positives)
    inv_t = jnp.float32(1.0 / temperature)
    lhs_a = (a_n * inv_t).astype(compute_dtype)   # (B, D)
    lhs_p = (p_n * inv_t).astype(compute_dtype)   # (B, D)
    p_t = p_n.T.astype(compute_dtype)             # (D, B)  RHS for ap & pp
    a_t = a_n.T.astype(compute_dtype)             # (D, B)  RHS for aa

    # Scores stay f32 so the false-negative mask matches the PyTorch math exactly.
    ap_sc = ap_scores.astype(jnp.float32)
    aa_sc = aa_scores.astype(jnp.float32)
    pp_sc = pp_scores.astype(jnp.float32)

    # reranker_threshold = diag(ap_scores); margin folded in here (hoisted out
    # of the kernel's per-step work).
    thr = jnp.diagonal(ap_sc)[:, None]            # (B, 1)
    if margin_strategy == "absolute":
        cutoff = thr - jnp.float32(margin)
    elif margin_strategy == "relative":
        cutoff = thr * jnp.float32(1.0 - margin)
    else:
        raise ValueError("margin_strategy must be 'absolute' or 'relative'.")
    cutoff = cutoff.astype(jnp.float32)

    # VMEM budget: each pipelined input counted x its buffer count (2), plus
    # the output block, scratch accumulators, f32 temporaries and headroom.
    esz = jnp.dtype(compute_dtype).itemsize
    per_buf = (2 * mb * D * esz        # lhs_a + lhs_p row tiles
               + 2 * D * tn * esz      # p_t + a_t column tiles
               + 3 * mb * tn * 4       # reranker score tiles (f32)
               + mb * 4)               # cutoff column
    vmem_needed = (2 * per_buf         # double-buffered pipeline
                   + 2 * mb * 4        # per-row CE output block
                   + 3 * mb * 4        # m / l / label accumulators
                   + 8 * mb * tn * 4   # f32 logit tiles + mask/exp temporaries
                   + (4 << 20))        # headroom for compiler internal scratch
    cap = _vmem_capacity_bytes()
    vmem_limit = int(min(max(vmem_needed, 32 << 20), int(cap * 0.85)))

    kernel = _partial(_gist_loss_kernel, mb=mb, tn=tn)

    ce_rows = pl.pallas_call(
        kernel,
        out_shape=jax.ShapeDtypeStruct((B, 1), jnp.float32),
        grid_spec=pltpu.PrefetchScalarGridSpec(
            num_scalar_prefetch=0,
            grid=(num_mb, num_col),                             # column axis last
            in_specs=[
                pl.BlockSpec((mb, D), lambda i, j: (i, 0)),     # anchor rows (scaled)
                pl.BlockSpec((mb, D), lambda i, j: (i, 0)),     # positive rows (scaled)
                pl.BlockSpec((D, tn), lambda i, j: (0, j)),     # positives^T col tile
                pl.BlockSpec((D, tn), lambda i, j: (0, j)),     # anchors^T col tile
                pl.BlockSpec((mb, tn), lambda i, j: (i, j)),    # ap reranker scores
                pl.BlockSpec((mb, tn), lambda i, j: (i, j)),    # aa reranker scores
                pl.BlockSpec((mb, tn), lambda i, j: (i, j)),    # pp reranker scores
                pl.BlockSpec((mb, 1), lambda i, j: (i, 0)),     # per-row cutoff
            ],
            out_specs=pl.BlockSpec((mb, 1), lambda i, j: (i, 0)),  # per-row CE
            scratch_shapes=[pltpu.VMEM((mb, 1), jnp.float32)] * 3,
        ),
        compiler_params=pltpu.CompilerParams(
            dimension_semantics=("parallel", "arbitrary"),
            vmem_limit_bytes=vmem_limit,
        ),
    )(lhs_a, lhs_p, p_t, a_t, ap_sc, aa_sc, pp_sc, cutoff)

    # sum over mini-batches of mean(ce_mb) * mb / B  ==  sum over rows ce / B
    return jnp.sum(ce_rows) / jnp.float32(B)


def _reference_loss(anchors, positives, ap_full, aa_full, pp_full,
                    *, temperature, margin, margin_strategy, mini_batch_size):
    """Pure-JAX f32 mirror of the PyTorch calculate_loss() math (forward only)."""
    B = anchors.shape[0]

    def cos(x, y):
        nx = jnp.linalg.norm(x, axis=-1, keepdims=True)
        ny = jnp.linalg.norm(y, axis=-1, keepdims=True)
        return (x @ y.T) / jnp.maximum(nx * ny.T, 1e-8)

    total = jnp.float32(0.0)
    for b in range(0, B, mini_batch_size):
        e = b + mini_batch_size
        ap_sc, aa_sc, pp_sc = ap_full[b:e], aa_full[b:e], pp_full[b:e]
        thr = jnp.diagonal(ap_sc, offset=b)[:, None]
        cutoff = thr - margin if margin_strategy == "absolute" else thr * (1 - margin)
        ap_sim = cos(anchors[b:e], positives)
        aa_sim = cos(anchors[b:e], anchors)
        pp_sim = cos(positives[b:e], positives)
        pos_mask = jnp.eye(mini_batch_size, B, k=b, dtype=bool)
        ap_sim = jnp.where((ap_sc > cutoff) & ~pos_mask, -jnp.inf, ap_sim)
        aa_sim = jnp.where(aa_sc > cutoff, -jnp.inf, aa_sim)
        pp_sim = jnp.where(pp_sc > cutoff, -jnp.inf, pp_sim)
        scores = jnp.concatenate([ap_sim, aa_sim, pp_sim], axis=1) / temperature
        logp = jax.nn.log_softmax(scores, axis=-1)
        labels = jnp.arange(b, e)
        ce = -logp[jnp.arange(mini_batch_size), labels]
        total = total + jnp.mean(ce) * scores.shape[0] / B
    return total


if __name__ == "__main__":
    # Small shapes consistent with the module: batch=16 sentence pairs,
    # embedding dim=128.
    B, D = 16, 128
    temperature, margin, margin_strategy = 0.01, 0.0, "absolute"

    key = jax.random.PRNGKey(0)
    k1, k2, k3, k4, k5 = jax.random.split(key, 5)
    anchors = jax.random.normal(k1, (B, D), dtype=jnp.float32)
    positives = jax.random.normal(k2, (B, D), dtype=jnp.float32)
    # TODO(synk): reranker API calls replaced by synthetic deterministic score matrices.
    ap_scores = jax.random.uniform(k3, (B, B), dtype=jnp.float32)
    aa_scores = jax.random.uniform(k4, (B, B), dtype=jnp.float32)
    pp_scores = jax.random.uniform(k5, (B, B), dtype=jnp.float32)

    # Kernel: defaults clamp to a single (16, 16) tile at this toy size.
    loss = reranker_cached_gist_loss(
        anchors, positives, ap_scores, aa_scores, pp_scores,
        temperature=temperature, margin=margin,
        margin_strategy=margin_strategy, mini_batch_size=256, col_tile=512)
    loss = jax.block_until_ready(loss)

    # Reference uses the module-like small mini-batch (8); the forward loss is
    # partition-invariant, so this also validates the larger kernel tile.
    ref = _reference_loss(
        anchors, positives, ap_scores, aa_scores, pp_scores,
        temperature=temperature, margin=margin,
        margin_strategy=margin_strategy, mini_batch_size=8)
    ref = jax.block_until_ready(ref)

    assert jnp.isfinite(loss), f"non-finite loss: {loss}"
    # Tolerance accounts for bf16 MXU operands (f32 accumulation); observed
    # error is ~0.1-0.3% on this loss scale.
    assert abs(float(loss) - float(ref)) <= 5e-2 + 1e-2 * abs(float(ref)), (
        f"mismatch: kernel={float(loss)} ref={float(ref)}")
    print("KERNEL_OK")
</pallas_src>

<mosaic_0001>
module attributes {stable_mosaic.version = 11 : i64} {
  func.func @_gist_loss_kernel(%arg0: i32, %arg1: i32, %arg2: memref<16x128xbf16, #tpu.memory_space<vmem>>, %arg3: memref<16x128xbf16, #tpu.memory_space<vmem>>, %arg4: memref<128x16xbf16, #tpu.memory_space<vmem>>, %arg5: memref<128x16xbf16, #tpu.memory_space<vmem>>, %arg6: memref<16x16xf32, #tpu.memory_space<vmem>>, %arg7: memref<16x16xf32, #tpu.memory_space<vmem>>, %arg8: memref<16x16xf32, #tpu.memory_space<vmem>>, %arg9: memref<16x1xf32, #tpu.memory_space<vmem>>, %arg10: memref<16x1xf32, #tpu.memory_space<vmem>>, %arg11: memref<16x1xf32, #tpu.memory_space<vmem>>, %arg12: memref<16x1xf32, #tpu.memory_space<vmem>>, %arg13: memref<16x1xf32, #tpu.memory_space<vmem>>) attributes {dimension_semantics = [#tpu.dimension_semantics<parallel>, #tpu.dimension_semantics<arbitrary>], iteration_bounds = array<i64: 1, 1>, scalar_prefetch = 0 : i64, scratch_operands = 3 : i64, tpu.core_type = #tpu.core_type<tc>, window_params = [{transform_indices = @transform_0, window_bounds = array<i64: 16, 128>}, {transform_indices = @transform_1, window_bounds = array<i64: 16, 128>}, {transform_indices = @transform_2, window_bounds = array<i64: 128, 16>}, {transform_indices = @transform_3, window_bounds = array<i64: 128, 16>}, {transform_indices = @transform_4, window_bounds = array<i64: 16, 16>}, {transform_indices = @transform_5, window_bounds = array<i64: 16, 16>}, {transform_indices = @transform_6, window_bounds = array<i64: 16, 16>}, {transform_indices = @transform_7, window_bounds = array<i64: 16, 1>}, {transform_indices = @transform_8, window_bounds = array<i64: 16, 1>}]} {
    %c0_i32 = arith.constant 0 : i32
    %0 = arith.cmpi eq, %arg1, %c0_i32 : i32
    %1 = arith.extui %0 : i1 to i32
    %c0_i32_0 = arith.constant 0 : i32
    %2 = arith.cmpi ne, %1, %c0_i32_0 : i32
    scf.if %2 {
      %cst_45 = arith.constant -1.000000e+30 : f32
      %83 = vector.broadcast %cst_45 : f32 to vector<16x1xf32>
      %c0_46 = arith.constant 0 : index
      %c0_47 = arith.constant 0 : index
      %84 = vector.load %arg11[%c0_46, %c0_47] : memref<16x1xf32, #tpu.memory_space<vmem>>, vector<16x1xf32>
      tpu.vector_store %arg11[%c0_46, %c0_47], %83 {strides = array<i32>} : memref<16x1xf32, #tpu.memory_space<vmem>>, vector<16x1xf32>,
      %cst_48 = arith.constant 0.000000e+00 : f32
      %85 = vector.broadcast %cst_48 : f32 to vector<16x1xf32>
      %c0_49 = arith.constant 0 : index
      %c0_50 = arith.constant 0 : index
      %86 = vector.load %arg12[%c0_49, %c0_50] : memref<16x1xf32, #tpu.memory_space<vmem>>, vector<16x1xf32>
      tpu.vector_store %arg12[%c0_49, %c0_50], %85 {strides = array<i32>} : memref<16x1xf32, #tpu.memory_space<vmem>>, vector<16x1xf32>,
      %cst_51 = arith.constant 0.000000e+00 : f32
      %87 = vector.broadcast %cst_51 : f32 to vector<16x1xf32>
      %c0_52 = arith.constant 0 : index
      %c0_53 = arith.constant 0 : index
      %88 = vector.load %arg13[%c0_52, %c0_53] : memref<16x1xf32, #tpu.memory_space<vmem>>, vector<16x1xf32>
      tpu.vector_store %arg13[%c0_52, %c0_53], %87 {strides = array<i32>} : memref<16x1xf32, #tpu.memory_space<vmem>>, vector<16x1xf32>,
    } else {
    }
    %c0 = arith.constant 0 : index
    %c0_1 = arith.constant 0 : index
    %3 = vector.load %arg2[%c0, %c0_1] : memref<16x128xbf16, #tpu.memory_space<vmem>>, vector<16x128xbf16>
    %c0_2 = arith.constant 0 : index
    %c0_3 = arith.constant 0 : index
    %4 = vector.load %arg3[%c0_2, %c0_3] : memref<16x128xbf16, #tpu.memory_space<vmem>>, vector<16x128xbf16>
    %c0_4 = arith.constant 0 : index
    %c0_5 = arith.constant 0 : index
    %5 = vector.load %arg4[%c0_4, %c0_5] : memref<128x16xbf16, #tpu.memory_space<vmem>>, vector<128x16xbf16>
    %cst = arith.constant dense<0.000000e+00> : vector<16x16xf32>
    %6 = tpu.matmul %3, %5, %cst {dimension_numbers = #tpu.dot_dimension_numbers<[1], [0], [0], [1], [0, 0, 1, 1], [], []>} : vector<16x128xbf16>, vector<128x16xbf16>, vector<16x16xf32> -> vector<16x16xf32>
    %c0_6 = arith.constant 0 : index
    %c0_7 = arith.constant 0 : index
    %7 = vector.load %arg5[%c0_6, %c0_7] : memref<128x16xbf16, #tpu.memory_space<vmem>>, vector<128x16xbf16>
    %cst_8 = arith.constant dense<0.000000e+00> : vector<16x16xf32>
    %8 = tpu.matmul %3, %7, %cst_8 {dimension_numbers = #tpu.dot_dimension_numbers<[1], [0], [0], [1], [0, 0, 1, 1], [], []>} : vector<16x128xbf16>, vector<128x16xbf16>, vector<16x16xf32> -> vector<16x16xf32>
    %cst_9 = arith.constant dense<0.000000e+00> : vector<16x16xf32>
    %9 = tpu.matmul %4, %5, %cst_9 {dimension_numbers = #tpu.dot_dimension_numbers<[1], [0], [0], [1], [0, 0, 1, 1], [], []>} : vector<16x128xbf16>, vector<128x16xbf16>, vector<16x16xf32> -> vector<16x16xf32>
    %c16_i32 = arith.constant 16 : i32
    %10 = arith.muli %arg0, %c16_i32 : i32
    %11 = tpu.iota {dimensions = array<i32: 0>} : vector<16x1xi32>
    %12 = vector.broadcast %10 : i32 to vector<16x1xi32>
    %13 = arith.addi %12, %11 : vector<16x1xi32>
    %c16_i32_10 = arith.constant 16 : i32
    %14 = arith.muli %arg1, %c16_i32_10 : i32
    %15 = tpu.iota {dimensions = array<i32: 1>} : vector<1x16xi32>
    %16 = vector.broadcast %14 : i32 to vector<1x16xi32>
    %17 = arith.addi %16, %15 : vector<1x16xi32>
    %18 = vector.broadcast %17 : vector<1x16xi32> to vector<16x16xi32>
    %19 = vector.broadcast %13 : vector<16x1xi32> to vector<16x16xi32>
    %20 = arith.cmpi eq, %18, %19 : vector<16x16xi32>
    %c0_11 = arith.constant 0 : index
    %c0_12 = arith.constant 0 : index
    %21 = vector.load %arg9[%c0_11, %c0_12] : memref<16x1xf32, #tpu.memory_space<vmem>>, vector<16x1xf32>
    %c0_13 = arith.constant 0 : index
    %c0_14 = arith.constant 0 : index
    %22 = vector.load %arg6[%c0_13, %c0_14] : memref<16x16xf32, #tpu.memory_space<vmem>>, vector<16x16xf32>
    %23 = vector.broadcast %21 : vector<16x1xf32> to vector<16x16xf32>
    %24 = arith.cmpf ogt, %22, %23 : vector<16x16xf32>
    %cst_15 = arith.constant dense<true> : vector<16x16xi1>
    %25 = arith.xori %20, %cst_15 : vector<16x16xi1>
    %26 = arith.andi %24, %25 : vector<16x16xi1>
    %cst_16 = arith.constant 0xFF800000 : f32
    %27 = vector.broadcast %cst_16 : f32 to vector<16x16xf32>
    %28 = arith.select %26, %27, %6 : vector<16x16xi1>, vector<16x16xf32>
    %c0_17 = arith.constant 0 : index
    %c0_18 = arith.constant 0 : index
    %29 = vector.load %arg7[%c0_17, %c0_18] : memref<16x16xf32, #tpu.memory_space<vmem>>, vector<16x16xf32>
    %30 = vector.broadcast %21 : vector<16x1xf32> to vector<16x16xf32>
    %31 = arith.cmpf ogt, %29, %30 : vector<16x16xf32>
    %cst_19 = arith.constant 0xFF800000 : f32
    %32 = vector.broadcast %cst_19 : f32 to vector<16x16xf32>
    %33 = arith.select %31, %32, %8 : vector<16x16xi1>, vector<16x16xf32>
    %c0_20 = arith.constant 0 : index
    %c0_21 = arith.constant 0 : index
    %34 = vector.load %arg8[%c0_20, %c0_21] : memref<16x16xf32, #tpu.memory_space<vmem>>, vector<16x16xf32>
    %35 = vector.broadcast %21 : vector<16x1xf32> to vector<16x16xf32>
    %36 = arith.cmpf ogt, %34, %35 : vector<16x16xf32>
    %cst_22 = arith.constant 0xFF800000 : f32
    %37 = vector.broadcast %cst_22 : f32 to vector<16x16xf32>
    %38 = arith.select %36, %37, %9 : vector<16x16xi1>, vector<16x16xf32>
    %c0_23 = arith.constant 0 : index
    %c0_24 = arith.constant 0 : index
    %39 = vector.load %arg13[%c0_23, %c0_24] : memref<16x1xf32, #tpu.memory_space<vmem>>, vector<16x1xf32>
    %cst_25 = arith.constant 0.000000e+00 : f32
    %40 = vector.broadcast %cst_25 : f32 to vector<16x16xf32>
    %41 = arith.select %20, %28, %40 : vector<16x16xi1>, vector<16x16xf32>
    %cst_26 = arith.constant dense<0.000000e+00> : vector<16xf32>
    %42 = vector.multi_reduction <add>, %41, %cst_26 [1] : vector<16x16xf32> to vector<16xf32>
    %43 = vector.shape_cast %42 : vector<16xf32> to vector<16x1xf32>
    %44 = arith.addf %39, %43 : vector<16x1xf32>
    %c0_27 = arith.constant 0 : index
    %c0_28 = arith.constant 0 : index
    %45 = vector.load %arg13[%c0_27, %c0_28] : memref<16x1xf32, #tpu.memory_space<vmem>>, vector<16x1xf32>
    tpu.vector_store %arg13[%c0_27, %c0_28], %44 {strides = array<i32>} : memref<16x1xf32, #tpu.memory_space<vmem>>, vector<16x1xf32>,
    %c0_29 = arith.constant 0 : index
    %c0_30 = arith.constant 0 : index
    %46 = vector.load %arg11[%c0_29, %c0_30] : memref<16x1xf32, #tpu.memory_space<vmem>>, vector<16x1xf32>
    %cst_31 = arith.constant dense<0xFF800000> : vector<16xf32>
    %47 = vector.multi_reduction <maximumf>, %28, %cst_31 [1] : vector<16x16xf32> to vector<16xf32>
    %48 = vector.shape_cast %47 : vector<16xf32> to vector<16x1xf32>
    %cst_32 = arith.constant dense<0xFF800000> : vector<16xf32>
    %49 = vector.multi_reduction <maximumf>, %33, %cst_32 [1] : vector<16x16xf32> to vector<16xf32>
    %50 = vector.shape_cast %49 : vector<16xf32> to vector<16x1xf32>
    %51 = arith.maximumf %48, %50 : vector<16x1xf32>
    %cst_33 = arith.constant dense<0xFF800000> : vector<16xf32>
    %52 = vector.multi_reduction <maximumf>, %38, %cst_33 [1] : vector<16x16xf32> to vector<16xf32>
    %53 = vector.shape_cast %52 : vector<16xf32> to vector<16x1xf32>
    %54 = arith.maximumf %51, %53 : vector<16x1xf32>
    %55 = arith.maximumf %46, %54 : vector<16x1xf32>
    %56 = arith.subf %46, %55 : vector<16x1xf32>
    %57 = math.exp %56 : vector<16x1xf32>
    %c0_34 = arith.constant 0 : index
    %c0_35 = arith.constant 0 : index
    %58 = vector.load %arg12[%c0_34, %c0_35] : memref<16x1xf32, #tpu.memory_space<vmem>>, vector<16x1xf32>
    %59 = arith.mulf %57, %58 : vector<16x1xf32>
    %60 = vector.broadcast %55 : vector<16x1xf32> to vector<16x16xf32>
    %61 = arith.subf %28, %60 : vector<16x16xf32>
    %62 = math.exp %61 : vector<16x16xf32>
    %cst_36 = arith.constant dense<0.000000e+00> : vector<16xf32>
    %63 = vector.multi_reduction <add>, %62, %cst_36 [1] : vector<16x16xf32> to vector<16xf32>
    %64 = vector.shape_cast %63 : vector<16xf32> to vector<16x1xf32>
    %65 = arith.addf %59, %64 : vector<16x1xf32>
    %66 = vector.broadcast %55 : vector<16x1xf32> to vector<16x16xf32>
    %67 = arith.subf %33, %66 : vector<16x16xf32>
    %68 = math.exp %67 : vector<16x16xf32>
    %cst_37 = arith.constant dense<0.000000e+00> : vector<16xf32>
    %69 = vector.multi_reduction <add>, %68, %cst_37 [1] : vector<16x16xf32> to vector<16xf32>
    %70 = vector.shape_cast %69 : vector<16xf32> to vector<16x1xf32>
    %71 = arith.addf %65, %70 : vector<16x1xf32>
    %72 = vector.broadcast %55 : vector<16x1xf32> to vector<16x16xf32>
    %73 = arith.subf %38, %72 : vector<16x16xf32>
    %74 = math.exp %73 : vector<16x16xf32>
    %cst_38 = arith.constant dense<0.000000e+00> : vector<16xf32>
    %75 = vector.multi_reduction <add>, %74, %cst_38 [1] : vector<16x16xf32> to vector<16xf32>
    %76 = vector.shape_cast %75 : vector<16xf32> to vector<16x1xf32>
    %77 = arith.addf %71, %76 : vector<16x1xf32>
    %c0_39 = arith.constant 0 : index
    %c0_40 = arith.constant 0 : index
    %78 = vector.load %arg12[%c0_39, %c0_40] : memref<16x1xf32, #tpu.memory_space<vmem>>, vector<16x1xf32>
    tpu.vector_store %arg12[%c0_39, %c0_40], %77 {strides = array<i32>} : memref<16x1xf32, #tpu.memory_space<vmem>>, vector<16x1xf32>,
    %c0_41 = arith.constant 0 : index
    %c0_42 = arith.constant 0 : index
    %79 = vector.load %arg11[%c0_41, %c0_42] : memref<16x1xf32, #tpu.memory_space<vmem>>, vector<16x1xf32>
    tpu.vector_store %arg11[%c0_41, %c0_42], %55 {strides = array<i32>} : memref<16x1xf32, #tpu.memory_space<vmem>>, vector<16x1xf32>,
    %c0_i32_43 = arith.constant 0 : i32
    %80 = arith.cmpi eq, %arg1, %c0_i32_43 : i32
    %81 = arith.extui %80 : i1 to i32
    %c0_i32_44 = arith.constant 0 : i32
    %82 = arith.cmpi ne, %81, %c0_i32_44 : i32
    scf.if %82 {
      %c0_45 = arith.constant 0 : index
      %c0_46 = arith.constant 0 : index
      %83 = vector.load %arg11[%c0_45, %c0_46] : memref<16x1xf32, #tpu.memory_space<vmem>>, vector<16x1xf32>
      %c0_47 = arith.constant 0 : index
      %c0_48 = arith.constant 0 : index
      %84 = vector.load %arg13[%c0_47, %c0_48] : memref<16x1xf32, #tpu.memory_space<vmem>>, vector<16x1xf32>
      %85 = arith.subf %83, %84 : vector<16x1xf32>
      %c0_49 = arith.constant 0 : index
      %c0_50 = arith.constant 0 : index
      %86 = vector.load %arg12[%c0_49, %c0_50] : memref<16x1xf32, #tpu.memory_space<vmem>>, vector<16x1xf32>
      %87 = math.log %86 : vector<16x1xf32>
      %88 = arith.addf %85, %87 : vector<16x1xf32>
      %c0_51 = arith.constant 0 : index
      %c0_52 = arith.constant 0 : index
      %89 = vector.load %arg10[%c0_51, %c0_52] : memref<16x1xf32, #tpu.memory_space<vmem>>, vector<16x1xf32>
      tpu.vector_store %arg10[%c0_51, %c0_52], %88 {strides = array<i32>} : memref<16x1xf32, #tpu.memory_space<vmem>>, vector<16x1xf32>,
    } else {
    }
    return
  }
  func.func @transform_0(%arg0: i32, %arg1: i32) -> (i32, i32) {
    %c0_i32 = arith.constant 0 : i32
    %c0_i32_0 = arith.constant 0 : i32
    return %arg0, %c0_i32 : i32, i32
  }
  func.func @transform_1(%arg0: i32, %arg1: i32) -> (i32, i32) {
    %c0_i32 = arith.constant 0 : i32
    %c0_i32_0 = arith.constant 0 : i32
    return %arg0, %c0_i32 : i32, i32
  }
  func.func @transform_2(%arg0: i32, %arg1: i32) -> (i32, i32) {
    %c0_i32 = arith.constant 0 : i32
    %c0_i32_0 = arith.constant 0 : i32
    return %c0_i32, %arg1 : i32, i32
  }
  func.func @transform_3(%arg0: i32, %arg1: i32) -> (i32, i32) {
    %c0_i32 = arith.constant 0 : i32
    %c0_i32_0 = arith.constant 0 : i32
    return %c0_i32, %arg1 : i32, i32
  }
  func.func @transform_4(%arg0: i32, %arg1: i32) -> (i32, i32) {
    %c0_i32 = arith.constant 0 : i32
    return %arg0, %arg1 : i32, i32
  }
  func.func @transform_5(%arg0: i32, %arg1: i32) -> (i32, i32) {
    %c0_i32 = arith.constant 0 : i32
    return %arg0, %arg1 : i32, i32
  }
  func.func @transform_6(%arg0: i32, %arg1: i32) -> (i32, i32) {
    %c0_i32 = arith.constant 0 : i32
    return %arg0, %arg1 : i32, i32
  }
  func.func @transform_7(%arg0: i32, %arg1: i32) -> (i32, i32) {
    %c0_i32 = arith.constant 0 : i32
    %c0_i32_0 = arith.constant 0 : i32
    return %arg0, %c0_i32 : i32, i32
  }
  func.func @transform_8(%arg0: i32, %arg1: i32) -> (i32, i32) {
    %c0_i32 = arith.constant 0 : i32
    %c0_i32_0 = arith.constant 0 : i32
    return %arg0, %c0_i32 : i32, i32
  }
}

</mosaic_0001>

<llo_original>
// kernel: tpu_custom_call.1
$region0: #{tpu_custom_call.1}
  #allocation0 [shape = 'u32[]', space=smem, size = 0x4, offset = 0x4, fixed_abs, tag = 'smem constant byte address 0x4 - core index']
  #allocation1 [shape = 'u32[144,128]{1,0:T(1,128)}', space=vmem, size = 0x12000, scoped, tag = 'internal scratch']
  #allocation2 [shape = 'f32[16,1]{1,0:T(8,128)}', space=vmem, size = 0x2000, scoped, tag = 'scratch operand']
  #allocation3 [shape = 'f32[16,1]{1,0:T(8,128)}', space=vmem, size = 0x2000, scoped, tag = 'scratch operand']
  #allocation4 [shape = 'f32[16,1]{1,0:T(8,128)}', space=vmem, size = 0x2000, scoped, tag = 'scratch operand']
  %s0 = inlined_call_operand.vmem [shape: bf16[16,128], index: 0, kind: input, shape index: {}]
  %s1 = inlined_call_operand.vmem [shape: bf16[16,128], index: 1, kind: input, shape index: {}]
  %s2 = inlined_call_operand.vmem [shape: bf16[128,16], index: 2, kind: input, shape index: {}]
  %s3 = inlined_call_operand.vmem [shape: bf16[128,16], index: 3, kind: input, shape index: {}]
  %s4 = inlined_call_operand.vmem [shape: f32[16,16], index: 4, kind: input, shape index: {}]
  %s5 = inlined_call_operand.vmem [shape: f32[16,16], index: 5, kind: input, shape index: {}]
  %s6 = inlined_call_operand.vmem [shape: f32[16,16], index: 6, kind: input, shape index: {}]
  %s7 = inlined_call_operand.vmem [shape: f32[16,1], index: 7, kind: input, shape index: {}]
  %s8 = inlined_call_operand.vmem [shape: f32[16,1], index: 8, kind: output, shape index: {}]
  %s9 = sld [smem:[#allocation0]]
  $region50: #{tpu_custom_call.1} parent=0
    _
  %s11 = ssub.s32 1, %s9
  %s12 = scalar_select 0, %s11, %s9
  // Predicated region
  $region2: #{tpu_custom_call.1} parent=0 // pred_check
    _
  $region3: #{tpu_custom_call.1} parent=0 // pred_check_branch
    %14 = sbr.rel (0) target = $region5
  $region4: #{tpu_custom_call.1} parent=0 // pred_region
    _
  $region5: #{tpu_custom_call.1} parent=0 // pred_fallthru
    _
  // Predicated region
  $region6: #{tpu_custom_call.1} parent=0 // pred_check
    _
  $region7: #{tpu_custom_call.1} parent=0 // pred_check_branch
    %16 = sbr.rel (0) target = $region9
  $region8: #{tpu_custom_call.1} parent=0 // pred_region
    _
  $region9: #{tpu_custom_call.1} parent=0 // pred_fallthru
    _
  // Predicated region
  $region10: #{tpu_custom_call.1} parent=0 // pred_check
    _
  $region11: #{tpu_custom_call.1} parent=0 // pred_check_branch
    %18 = sbr.rel (0) target = $region13
  $region12: #{tpu_custom_call.1} parent=0 // pred_region
    _
  $region13: #{tpu_custom_call.1} parent=0 // pred_fallthru
    _
  // Predicated region
  $region14: #{tpu_custom_call.1} parent=0 // pred_check
    _
  $region15: #{tpu_custom_call.1} parent=0 // pred_check_branch
    %20 = sbr.rel (0) target = $region17
  $region16: #{tpu_custom_call.1} parent=0 // pred_region
    _
  $region17: #{tpu_custom_call.1} parent=0 // pred_fallthru
    _
  // Predicated region
  $region18: #{tpu_custom_call.1} parent=0 // pred_check
    _
  $region19: #{tpu_custom_call.1} parent=0 // pred_check_branch
    %22 = sbr.rel (0) target = $region21
  $region20: #{tpu_custom_call.1} parent=0 // pred_region
    _
  $region21: #{tpu_custom_call.1} parent=0 // pred_fallthru
    _
  // Predicated region
  $region22: #{tpu_custom_call.1} parent=0 // pred_check
    _
  $region23: #{tpu_custom_call.1} parent=0 // pred_check_branch
    %24 = sbr.rel (0) target = $region25
  $region24: #{tpu_custom_call.1} parent=0 // pred_region
    _
  $region25: #{tpu_custom_call.1} parent=0 // pred_fallthru
    _
  // Predicated region
  $region26: #{tpu_custom_call.1} parent=0 // pred_check
    _
  $region27: #{tpu_custom_call.1} parent=0 // pred_check_branch
    %26 = sbr.rel (0) target = $region29
  $region28: #{tpu_custom_call.1} parent=0 // pred_region
    _
  $region29: #{tpu_custom_call.1} parent=0 // pred_fallthru
    _
  // Predicated region
  $region30: #{tpu_custom_call.1} parent=0 // pred_check
    _
  $region31: #{tpu_custom_call.1} parent=0 // pred_check_branch
    %28 = sbr.rel (0) target = $region33
  $region32: #{tpu_custom_call.1} parent=0 // pred_region
    _
  $region33: #{tpu_custom_call.1} parent=0 // pred_fallthru
    _
  %p30 = scmp.eq.s32.totalorder 0, 0
  // Predicated region
  $region34: #{tpu_custom_call.1} parent=0 // pred_check
    %p31 = pneg %p30
  $region35: #{tpu_custom_call.1} parent=0 // pred_check_branch
    %33 = sbr.rel (%p31) target = $region37
  $region36: #{tpu_custom_call.1} parent=0 // pred_region
    %vm34 = vcmask 7168
    %35 = vst.msk [vmem:[#allocation2] sm:$0xff] %vm34, -1e+30
    %36 = vst.msk [vmem:[#allocation2 + $0x8] sm:$0xff] %vm34, -1e+30
    %37 = vst.msk [vmem:[#allocation3] sm:$0xff] %vm34, 0.0
    %38 = vst.msk [vmem:[#allocation3 + $0x8] sm:$0xff] %vm34, 0.0
    %39 = vst.msk [vmem:[#allocation4] sm:$0xff] %vm34, 0.0
    %40 = vst.msk [vmem:[#allocation4 + $0x8] sm:$0xff] %vm34, 0.0
  $region37: #{tpu_custom_call.1} parent=0 // pred_fallthru
    _
  %v41 = vld [vmem:[%s0] sm:$0xf]
  %v42 = vld [vmem:[%s0 + $0x4] sm:$0xf]
  %v43 = vld [vmem:[%s1] sm:$0xf]
  %v44 = vld [vmem:[%s1 + $0x4] sm:$0xf]
  %v45 = vld [vmem:[%s2] sm:$0xf]
  %v46 = vld [vmem:[%s2 + $0x4] sm:$0xf]
  %v47 = vld [vmem:[%s2 + $0x8] sm:$0xf]
  %v48 = vld [vmem:[%s2 + $0xc] sm:$0xf]
  %v49 = vld [vmem:[%s2 + $0x10] sm:$0xf]
  %v50 = vld [vmem:[%s2 + $0x14] sm:$0xf]
  %v51 = vld [vmem:[%s2 + $0x18] sm:$0xf]
  %v52 = vld [vmem:[%s2 + $0x1c] sm:$0xf]
  %v53 = vld [vmem:[%s2 + $0x20] sm:$0xf]
  %v54 = vld [vmem:[%s2 + $0x24] sm:$0xf]
  %v55 = vld [vmem:[%s2 + $0x28] sm:$0xf]
  %v56 = vld [vmem:[%s2 + $0x2c] sm:$0xf]
  %v57 = vld [vmem:[%s2 + $0x30] sm:$0xf]
  %v58 = vld [vmem:[%s2 + $0x34] sm:$0xf]
  %v59 = vld [vmem:[%s2 + $0x38] sm:$0xf]
  %v60 = vld [vmem:[%s2 + $0x3c] sm:$0xf]
  %v63 = vunpack.c.l.b16 %v41
  %v64 = vunpack.c.l.b16 %v42
  %v65 = vpack.c.b16 %v64, %v63
  %v83 = vunpack.c.l.b16 %v45
  %v84 = vunpack.c.l.b16 %v46
  %v85 = vunpack.c.l.b16 %v47
  %v86 = vunpack.c.l.b16 %v48
  %v87 = vunpack.c.l.b16 %v49
  %v88 = vunpack.c.l.b16 %v50
  %v89 = vunpack.c.l.b16 %v51
  %v90 = vunpack.c.l.b16 %v52
  %v91 = vunpack.c.l.b16 %v53
  %v92 = vunpack.c.l.b16 %v54
  %v93 = vunpack.c.l.b16 %v55
  %v94 = vunpack.c.l.b16 %v56
  %v95 = vunpack.c.l.b16 %v57
  %v96 = vunpack.c.l.b16 %v58
  %v97 = vunpack.c.l.b16 %v59
  %v98 = vunpack.c.l.b16 %v60
  %v99 = vpack.c.b16 %v84, %v83
  %v100 = vpack.c.b16 %v86, %v85
  %v101 = vpack.c.b16 %v88, %v87
  %v102 = vpack.c.b16 %v90, %v89
  %v103 = vpack.c.b16 %v92, %v91
  %v104 = vpack.c.b16 %v94, %v93
  %v105 = vpack.c.b16 %v96, %v95
  %v106 = vpack.c.b16 %v98, %v97
  %115 = vmatprep.subr.bf16.mxu0 0
  %116 = vmatpush1.bf16.msra.mxu0 %v106
  %117 = vmatprep.subr.bf16.mxu0 0
  %118 = vmatpush1.bf16.msra.mxu0 %v105
  %119 = vmatprep.subr.bf16.mxu0 0
  %120 = vmatpush1.bf16.msra.mxu0 %v104
  %121 = vmatprep.subr.bf16.mxu0 0
  %122 = vmatpush1.bf16.msra.mxu0 %v103
  %123 = vmatprep.subr.bf16.mxu0 0
  %124 = vmatpush1.bf16.msra.mxu0 %v102
  %125 = vmatprep.subr.bf16.mxu0 0
  %126 = vmatpush1.bf16.msra.mxu0 %v101
  %127 = vmatprep.subr.bf16.mxu0 0
  %128 = vmatpush1.bf16.msra.mxu0 %v100
  %129 = vmatprep.subr.bf16.mxu0 0
  %130 = vmatpush1.bf16.msra.mxu0 %v99
  %131 = vmatprep.subr.bf16.mxu0 0
  %132 = vmatpush2.bf16.msra.mxu0 0
  %133 = vmatprep.subr.bf16.mxu0 0
  %134 = vmatpush2.bf16.msra.mxu0 0
  %135 = vmatprep.subr.bf16.mxu0 0
  %136 = vmatpush2.bf16.msra.mxu0 0
  %137 = vmatprep.subr.bf16.mxu0 0
  %138 = vmatpush2.bf16.msra.mxu0 0
  %139 = vmatprep.subr.bf16.mxu0 0
  %140 = vmatpush2.bf16.msra.mxu0 0
  %141 = vmatprep.subr.bf16.mxu0 0
  %142 = vmatpush2.bf16.msra.mxu0 0
  %143 = vmatprep.subr.bf16.mxu0 0
  %144 = vmatpush2.bf16.msra.mxu0 0
  %145 = vmatprep.subr.bf16.mxu0 0
  %146 = vmatpush2.bf16.msra.mxu0 0
  %147 = vmatprep.mubr.bf16.mxu0 0
  %148 = vmatmul.mubr.bf16.gmra.mxu0 %v65
  %v149 = vpop.f32.mrf.mxu0
  %v150 = vadd.f32 0.0, %v149
  %v151 = vpop.f32.mrf.mxu0
  %v152 = vpop.f32.mrf.mxu0
  %v153 = vadd.f32 0.0, %v152
  %v154 = vpop.f32.mrf.mxu0
  %155 = vdwg.mxu0
  %v156 = vld [vmem:[%s3] sm:$0xf]
  %v157 = vld [vmem:[%s3 + $0x4] sm:$0xf]
  %v158 = vld [vmem:[%s3 + $0x8] sm:$0xf]
  %v159 = vld [vmem:[%s3 + $0xc] sm:$0xf]
  %v160 = vld [vmem:[%s3 + $0x10] sm:$0xf]
  %v161 = vld [vmem:[%s3 + $0x14] sm:$0xf]
  %v162 = vld [vmem:[%s3 + $0x18] sm:$0xf]
  %v163 = vld [vmem:[%s3 + $0x1c] sm:$0xf]
  %v164 = vld [vmem:[%s3 + $0x20] sm:$0xf]
  %v165 = vld [vmem:[%s3 + $0x24] sm:$0xf]
  %v166 = vld [vmem:[%s3 + $0x28] sm:$0xf]
  %v167 = vld [vmem:[%s3 + $0x2c] sm:$0xf]
  %v168 = vld [vmem:[%s3 + $0x30] sm:$0xf]
  %v169 = vld [vmem:[%s3 + $0x34] sm:$0xf]
  %v170 = vld [vmem:[%s3 + $0x38] sm:$0xf]
  %v171 = vld [vmem:[%s3 + $0x3c] sm:$0xf]
  %v188 = vunpack.c.l.b16 %v156
  %v189 = vunpack.c.l.b16 %v157
  %v190 = vunpack.c.l.b16 %v158
  %v191 = vunpack.c.l.b16 %v159
  %v192 = vunpack.c.l.b16 %v160
  %v193 = vunpack.c.l.b16 %v161
  %v194 = vunpack.c.l.b16 %v162
  %v195 = vunpack.c.l.b16 %v163
  %v196 = vunpack.c.l.b16 %v164
  %v197 = vunpack.c.l.b16 %v165
  %v198 = vunpack.c.l.b16 %v166
  %v199 = vunpack.c.l.b16 %v167
  %v200 = vunpack.c.l.b16 %v168
  %v201 = vunpack.c.l.b16 %v169
  %v202 = vunpack.c.l.b16 %v170
  %v203 = vunpack.c.l.b16 %v171
  %v204 = vpack.c.b16 %v189, %v188
  %v205 = vpack.c.b16 %v191, %v190
  %v206 = vpack.c.b16 %v193, %v192
  %v207 = vpack.c.b16 %v195, %v194
  %v208 = vpack.c.b16 %v197, %v196
  %v209 = vpack.c.b16 %v199, %v198
  %v210 = vpack.c.b16 %v201, %v200
  %v211 = vpack.c.b16 %v203, %v202
  %220 = vmatprep.subr.bf16.mxu0 0
  %221 = vmatpush1.bf16.msra.mxu0 %v211
  %222 = vmatprep.subr.bf16.mxu0 0
  %223 = vmatpush1.bf16.msra.mxu0 %v210
  %224 = vmatprep.subr.bf16.mxu0 0
  %225 = vmatpush1.bf16.msra.mxu0 %v209
  %226 = vmatprep.subr.bf16.mxu0 0
  %227 = vmatpush1.bf16.msra.mxu0 %v208
  %228 = vmatprep.subr.bf16.mxu0 0
  %229 = vmatpush1.bf16.msra.mxu0 %v207
  %230 = vmatprep.subr.bf16.mxu0 0
  %231 = vmatpush1.bf16.msra.mxu0 %v206
  %232 = vmatprep.subr.bf16.mxu0 0
  %233 = vmatpush1.bf16.msra.mxu0 %v205
  %234 = vmatprep.subr.bf16.mxu0 0
  %235 = vmatpush1.bf16.msra.mxu0 %v204
  %236 = vmatprep.subr.bf16.mxu0 0
  %237 = vmatpush2.bf16.msra.mxu0 0
  %238 = vmatprep.subr.bf16.mxu0 0
  %239 = vmatpush2.bf16.msra.mxu0 0
  %240 = vmatprep.subr.bf16.mxu0 0
  %241 = vmatpush2.bf16.msra.mxu0 0
  %242 = vmatprep.subr.bf16.mxu0 0
  %243 = vmatpush2.bf16.msra.mxu0 0
  %244 = vmatprep.subr.bf16.mxu0 0
  %245 = vmatpush2.bf16.msra.mxu0 0
  %246 = vmatprep.subr.bf16.mxu0 0
  %247 = vmatpush2.bf16.msra.mxu0 0
  %248 = vmatprep.subr.bf16.mxu0 0
  %249 = vmatpush2.bf16.msra.mxu0 0
  %250 = vmatprep.subr.bf16.mxu0 0
  %251 = vmatpush2.bf16.msra.mxu0 0
  %252 = vmatprep.mubr.bf16.mxu0 0
  %253 = vmatmul.mubr.bf16.gmra.mxu0 %v65
  %v254 = vpop.f32.mrf.mxu0
  %v255 = vadd.f32 0.0, %v254
  %v256 = vpop.f32.mrf.mxu0
  %v257 = vpop.f32.mrf.mxu0
  %v258 = vadd.f32 0.0, %v257
  %v259 = vpop.f32.mrf.mxu0
  %260 = vdwg.mxu0
  %v263 = vunpack.c.l.b16 %v43
  %v264 = vunpack.c.l.b16 %v44
  %v265 = vpack.c.b16 %v264, %v263
  %267 = vmatprep.subr.bf16.mxu0 0
  %268 = vmatpush1.bf16.msra.mxu0 %v106
  %269 = vmatprep.subr.bf16.mxu0 0
  %270 = vmatpush1.bf16.msra.mxu0 %v105
  %271 = vmatprep.subr.bf16.mxu0 0
  %272 = vmatpush1.bf16.msra.mxu0 %v104
  %273 = vmatprep.subr.bf16.mxu0 0
  %274 = vmatpush1.bf16.msra.mxu0 %v103
  %275 = vmatprep.subr.bf16.mxu0 0
  %276 = vmatpush1.bf16.msra.mxu0 %v102
  %277 = vmatprep.subr.bf16.mxu0 0
  %278 = vmatpush1.bf16.msra.mxu0 %v101
  %279 = vmatprep.subr.bf16.mxu0 0
  %280 = vmatpush1.bf16.msra.mxu0 %v100
  %281 = vmatprep.subr.bf16.mxu0 0
  %282 = vmatpush1.bf16.msra.mxu0 %v99
  %283 = vmatprep.subr.bf16.mxu0 0
  %284 = vmatpush2.bf16.msra.mxu0 0
  %285 = vmatprep.subr.bf16.mxu0 0
  %286 = vmatpush2.bf16.msra.mxu0 0
  %287 = vmatprep.subr.bf16.mxu0 0
  %288 = vmatpush2.bf16.msra.mxu0 0
  %289 = vmatprep.subr.bf16.mxu0 0
  %290 = vmatpush2.bf16.msra.mxu0 0
  %291 = vmatprep.subr.bf16.mxu0 0
  %292 = vmatpush2.bf16.msra.mxu0 0
  %293 = vmatprep.subr.bf16.mxu0 0
  %294 = vmatpush2.bf16.msra.mxu0 0
  %295 = vmatprep.subr.bf16.mxu0 0
  %296 = vmatpush2.bf16.msra.mxu0 0
  %297 = vmatprep.subr.bf16.mxu0 0
  %298 = vmatpush2.bf16.msra.mxu0 0
  %299 = vmatprep.mubr.bf16.mxu0 0
  %300 = vmatmul.mubr.bf16.gmra.mxu0 %v265
  %v301 = vpop.f32.mrf.mxu0
  %v302 = vadd.f32 0.0, %v301
  %v303 = vpop.f32.mrf.mxu0
  %v304 = vpop.f32.mrf.mxu0
  %v305 = vadd.f32 0.0, %v304
  %v306 = vpop.f32.mrf.mxu0
  %307 = vdwg.mxu0
  %s308 = smul.u32 0, 16
  %v309 = vlaneseq
  %v310 = vshrl.u32 %v309, 7
  %v311 = vadd.s32 %v310, 8
  %v312 = vstv %s308
  %v313 = vadd.s32 %v312, %v310
  %v314 = vadd.s32 %v312, %v311
  %s315 = smul.u32 0, 16
  %v316 = vlaneseq
  %v317 = vand.u32 %v316, 127
  %v318 = vstv %s315
  %v319 = vadd.s32 %v318, %v317
  %vm320 = vcmp.eq.s32.totalorder %v319, %v313
  %vm321 = vcmp.eq.s32.totalorder %v319, %v314
  %v322 = vld [vmem:[%s7] sm:$0xff]
  %v323 = vld [vmem:[%s7 + $0x8] sm:$0xff]
  %v324 = vld [vmem:[%s4] sm:$0xff]
  %v325 = vld [vmem:[%s4 + $0x8] sm:$0xff]
  %327 = vset.pattern.permute.xlu0 0
  %328 = vperm.xlu0 %327, %v322
  %v329 = vpop.permute.xlu0 %328
  %332 = vset.pattern.permute.xlu0 0
  %333 = vperm.xlu0 %332, %v323
  %v334 = vpop.permute.xlu0 %333
  %vm336 = vcmp.gt.f32.partialorder %v324, %v329
  %vm337 = vcmp.gt.f32.partialorder %v325, %v334
  %vm338 = vmxor %vm320, 1
  %vm339 = vmxor %vm321, 1
  %vm340 = vmand %vm336, %vm338
  %vm341 = vmand %vm337, %vm339
  %v342 = vsel %vm340, -inf, %v150
  %v343 = vsel %vm341, -inf, %v153
  %v344 = vld [vmem:[%s5] sm:$0xff]
  %v345 = vld [vmem:[%s5 + $0x8] sm:$0xff]
  %vm346 = vcmp.gt.f32.partialorder %v344, %v329
  %vm347 = vcmp.gt.f32.partialorder %v345, %v334
  %v348 = vsel %vm346, -inf, %v255
  %v349 = vsel %vm347, -inf, %v258
  %v350 = vld [vmem:[%s6] sm:$0xff]
  %v351 = vld [vmem:[%s6 + $0x8] sm:$0xff]
  %vm352 = vcmp.gt.f32.partialorder %v350, %v329
  %vm353 = vcmp.gt.f32.partialorder %v351, %v334
  %v354 = vsel %vm352, -inf, %v302
  %v355 = vsel %vm353, -inf, %v305
  %v356 = vld [vmem:[#allocation4] sm:$0xff]
  %v357 = vld [vmem:[#allocation4 + $0x8] sm:$0xff]
  %v358 = vsel %vm320, %v342, 0.0
  %v359 = vsel %vm321, %v343, 0.0
  %vm360 = vcmask 130048
  %v361 = vsel %vm360, %v358, 0.0
  %362 = vadd.xlane.f32.xlu0 %v361
  %v363 = vpop.xlane.xlu0 %362
  %v364 = vsel %vm360, %v359, 0.0
  %365 = vadd.xlane.f32.xlu0 %v364
  %v366 = vpop.xlane.xlu0 %365
  %v367 = vadd.f32 %v356, %v363
  %v368 = vadd.f32 %v357, %v366
  %vm369 = vcmask 7168
  %370 = vst.msk [vmem:[#allocation4] sm:$0xff] %vm369, %v367
  %371 = vst.msk [vmem:[#allocation4 + $0x8] sm:$0xff] %vm369, %v368
  %v372 = vld [vmem:[#allocation2] sm:$0xff]
  %v373 = vld [vmem:[#allocation2 + $0x8] sm:$0xff]
  %v374 = vsel %vm360, %v342, -inf
  %375 = vmax.xlane.f32.xlu0 %v374
  %v376 = vpop.xlane.xlu0 %375
  %v377 = vsel %vm360, %v343, -inf
  %378 = vmax.xlane.f32.xlu0 %v377
  %v379 = vpop.xlane.xlu0 %378
  %v380 = vsel %vm360, %v348, -inf
  %381 = vmax.xlane.f32.xlu0 %v380
  %v382 = vpop.xlane.xlu0 %381
  %v383 = vsel %vm360, %v349, -inf
  %384 = vmax.xlane.f32.xlu0 %v383
  %v385 = vpop.xlane.xlu0 %384
  %v386 = vmax.f32 %v376, %v382
  %v387 = vmax.f32 %v379, %v385
  %v388 = vsel %vm360, %v354, -inf
  %389 = vmax.xlane.f32.xlu0 %v388
  %v390 = vpop.xlane.xlu0 %389
  %v391 = vsel %vm360, %v355, -inf
  %392 = vmax.xlane.f32.xlu0 %v391
  %v393 = vpop.xlane.xlu0 %392
  %v394 = vmax.f32 %v386, %v390
  %v395 = vmax.f32 %v387, %v393
  %v396 = vmax.f32 %v372, %v394
  %v397 = vmax.f32 %v373, %v395
  %v398 = vsub.f32 %v372, %v396
  %v399 = vsub.f32 %v373, %v397
  %v400 = vmul.f32 %v398, 1.442695
  %v401 = vpow.pop %v400
  %v402 = vmul.f32 %v399, 1.442695
  %v403 = vpow.pop %v402
  %v404 = vld [vmem:[#allocation3] sm:$0xff]
  %v405 = vld [vmem:[#allocation3 + $0x8] sm:$0xff]
  %v406 = vmul.f32 %v401, %v404
  %v407 = vmul.f32 %v403, %v405
  %409 = vset.pattern.permute.xlu0 0
  %410 = vperm.xlu0 %409, %v396
  %v411 = vpop.permute.xlu0 %410
  %414 = vset.pattern.permute.xlu0 0
  %415 = vperm.xlu0 %414, %v397
  %v416 = vpop.permute.xlu0 %415
  %v418 = vsub.f32 %v342, %v411
  %v419 = vsub.f32 %v343, %v416
  %v420 = vmul.f32 %v418, 1.442695
  %v421 = vpow.pop %v420
  %v422 = vmul.f32 %v419, 1.442695
  %v423 = vpow.pop %v422
  %v424 = vsel %vm360, %v421, 0.0
  %425 = vadd.xlane.f32.xlu0 %v424
  %v426 = vpop.xlane.xlu0 %425
  %v427 = vsel %vm360, %v423, 0.0
  %428 = vadd.xlane.f32.xlu0 %v427
  %v429 = vpop.xlane.xlu0 %428
  %v430 = vadd.f32 %v406, %v426
  %v431 = vadd.f32 %v407, %v429
  %v432 = vsub.f32 %v348, %v411
  %v433 = vsub.f32 %v349, %v416
  %v434 = vmul.f32 %v432, 1.442695
  %v435 = vpow.pop %v434
  %v436 = vmul.f32 %v433, 1.442695
  %v437 = vpow.pop %v436
  %v438 = vsel %vm360, %v435, 0.0
  %439 = vadd.xlane.f32.xlu0 %v438
  %v440 = vpop.xlane.xlu0 %439
  %v441 = vsel %vm360, %v437, 0.0
  %442 = vadd.xlane.f32.xlu0 %v441
  %v443 = vpop.xlane.xlu0 %442
  %v444 = vadd.f32 %v430, %v440
  %v445 = vadd.f32 %v431, %v443
  %v446 = vsub.f32 %v354, %v411
  %v447 = vsub.f32 %v355, %v416
  %v448 = vmul.f32 %v446, 1.442695
  %v449 = vpow.pop %v448
  %v450 = vmul.f32 %v447, 1.442695
  %v451 = vpow.pop %v450
  %v452 = vsel %vm360, %v449, 0.0
  %453 = vadd.xlane.f32.xlu0 %v452
  %v454 = vpop.xlane.xlu0 %453
  %v455 = vsel %vm360, %v451, 0.0
  %456 = vadd.xlane.f32.xlu0 %v455
  %v457 = vpop.xlane.xlu0 %456
  %v458 = vadd.f32 %v444, %v454
  %v459 = vadd.f32 %v445, %v457
  %460 = vst.msk [vmem:[#allocation3] sm:$0xff] %vm369, %v458
  %461 = vst.msk [vmem:[#allocation3 + $0x8] sm:$0xff] %vm369, %v459
  %462 = vst.msk [vmem:[#allocation2] sm:$0xff] %vm369, %v396
  %463 = vst.msk [vmem:[#allocation2 + $0x8] sm:$0xff] %vm369, %v397
  // Predicated region
  $region38: #{tpu_custom_call.1} parent=0 // pred_check
    %p464 = pneg %p30
  $region39: #{tpu_custom_call.1} parent=0 // pred_check_branch
    %466 = sbr.rel (%p464) target = $region41
  $region40: #{tpu_custom_call.1} parent=0 // pred_region
    %v467 = vld [vmem:[#allocation2] sm:$0xff]
    %v468 = vld [vmem:[#allocation2 + $0x8] sm:$0xff]
    %v469 = vld [vmem:[#allocation4] sm:$0xff]
    %v470 = vld [vmem:[#allocation4 + $0x8] sm:$0xff]
    %v471 = vsub.f32 %v467, %v469
    %v472 = vsub.f32 %v468, %v470
    %v473 = vld [vmem:[#allocation3] sm:$0xff]
    %v474 = vld [vmem:[#allocation3 + $0x8] sm:$0xff]
    %v475 = vlog2.pop %v473
    %v476 = vmul.f32 %v475, 0.6931472
    %v477 = vlog2.pop %v474
    %v478 = vmul.f32 %v477, 0.6931472
    %v479 = vadd.f32 %v471, %v476
    %v480 = vadd.f32 %v472, %v478
    %481 = vst.msk [vmem:[%s8] sm:$0xff] %vm369, %v479
    %482 = vst.msk [vmem:[%s8 + $0x8] sm:$0xff] %vm369, %v480
  $region41: #{tpu_custom_call.1} parent=0 // pred_fallthru
    _
  // Predicated region
  $region42: #{tpu_custom_call.1} parent=0 // pred_check
    _
  $region43: #{tpu_custom_call.1} parent=0 // pred_check_branch
    %484 = sbr.rel (0) target = $region45
  $region44: #{tpu_custom_call.1} parent=0 // pred_region
    _
  $region45: #{tpu_custom_call.1} parent=0 // pred_fallthru
    _
  // Predicated region
  $region46: #{tpu_custom_call.1} parent=0 // pred_check
    _
  $region47: #{tpu_custom_call.1} parent=0 // pred_check_branch
    %486 = sbr.rel (0) target = $region49
  $region48: #{tpu_custom_call.1} parent=0 // pred_region
    _
  $region49: #{tpu_custom_call.1} parent=0 // pred_fallthru
    _

</llo_original>
